<compile_context>
chip_gen: v7x
topology: tpu7x:2x2x1
jax: 0.10.0
libtpu: 0.0.40
codegen_flags: <defaults>
</compile_context>

<pallas_src>
import jax
import jax.numpy as jnp
from jax.experimental import pallas as pl
from jax.experimental.pallas import tpu as pltpu


def graphconv_kernel(xsw_ref, dhat_ref, a_ref, mask_ref, b_ref, o_ref):
    # xsw_ref  : (TB, N,  Fout_p)  -- (dhat*x)@W.T, resident across row tiles
    # dhat_ref : (TB, TM, 1)       -- row tile of dhat
    # a_ref    : (TB, TM, N)       -- row tile of A (bf16 or f32)
    # mask_ref : (TB, TM, 1)
    # b_ref    : (1,  Fout_p)
    # o_ref    : (TB, TM, Fout_p)
    tb, tm, _ = a_ref.shape
    r0 = pl.multiple_of(pl.program_id(1) * tm, tm)

    # Single MXU-friendly matmul: contraction over all N, output Fout_p wide.
    y = jnp.einsum("brn,bnf->brf", a_ref[...], xsw_ref[...],
                   preferred_element_type=jnp.float32)        # (TB, TM, Fout_p)

    # A_hat = A + I folded in: add this tile's own rows of xsW.
    xsw_rows = xsw_ref[:, pl.ds(r0, tm), :].astype(jnp.float32)
    out = dhat_ref[...] * (y + xsw_rows) + b_ref[...][None]   # bias, lane-dense
    out = out * mask_ref[...]                                  # broadcast over Fout
    o_ref[...] = out.astype(o_ref.dtype)


def _vmem_capacity_bytes():
    """Per-TensorCore VMEM capacity; conservative fallback if query fails."""
    try:
        cap = getattr(pltpu.get_tpu_info(), "vmem_capacity_bytes", None)
        if cap:
            return int(cap)
    except Exception:
        pass
    return 64 << 20   # v7x per-TC VMEM; safe lower bound for v5e/v6e too


def _choose_tiles(B, N, Fout_p, a_item, xsw_item, out_item, budget):
    """Pick (TB, TM): batch elements / adjacency rows per grid step."""
    tb = 1
    for c in (64, 32, 16, 8, 4, 2):
        if B % c == 0:
            tb = c
            break
    row_cands = [N] + [c for c in (2048, 1024, 512, 256, 128, 64, 32, 16, 8)
                       if c < N and N % c == 0]

    def per_step_bytes(tb_, tm_):
        # double-buffered streaming blocks (honest: every BlockSpec input/output)
        stream = (2 * tb_ * tm_ * N * a_item          # A row tile
                  + 2 * tb_ * N * Fout_p * xsw_item   # xsW batch tile
                  + 2 * tb_ * tm_ * Fout_p * out_item # out tile
                  + 2 * tb_ * tm_ * 2 * 4             # dhat + mask row tiles
                  + 2 * Fout_p * 4)                   # bias
        # in-kernel f32 intermediates (y, pre-cast out, xsw_rows)
        interm = 3 * tb_ * tm_ * Fout_p * 4
        return stream + interm

    while True:
        for tm in row_cands:
            if per_step_bytes(tb, tm) <= budget:
                return tb, tm, per_step_bytes(tb, tm)
        if tb == 1:
            tm = row_cands[-1]
            return 1, tm, per_step_bytes(1, tm)
        tb //= 2


def _ensure_multistep(B, N, TB, TM):
    """v7x has 2 TensorCores; make the parallel grid >= 2 steps when possible."""
    while (B // TB) * (N // TM) < 2:
        if TB > 1:
            TB //= 2
        elif TM > 8 and (TM // 2) % 8 == 0 and N % (TM // 2) == 0:
            TM //= 2
        else:
            break
    return TB, TM


def graph_conv_forward(x, A, mask, W, b, *, use_bf16=True):
    """x: (B,N,Fin) f32, A: (B,N,N) f32, mask: (B,N) or (B,N,1),
       W: (Fout,Fin) nn.Linear weight, b: (Fout,).
       Returns (out, A_unsqueezed, mask_unsqueezed) like the PyTorch module."""
    B, N, Fin = x.shape
    Fout = W.shape[0]
    if mask.ndim == 2:
        mask = mask[:, :, None]
    mask = mask.astype(jnp.float32)

    # D_hat = (sum(A + I, dim=1) + 1e-5)^-0.5, from f32 A to match reference
    # numerics. TODO(synk): for very large N fuse this reduction with A's
    # producer (or a Pallas pre-pass) to avoid a second full read of A.
    dhat = jax.lax.rsqrt(jnp.sum(A.astype(jnp.float32), axis=1) + (1.0 + 1e-5))
    dhat = dhat[:, :, None]                                       # (B, N, 1)

    # Lane-dense output padding only when the A stream dominates (N >= 128);
    # for tiny graphs the 4x output inflation + post-slice isn't worth it.
    if Fout % 128 != 0 and N >= 128:
        Fout_p = ((Fout + 127) // 128) * 128
    else:
        Fout_p = Fout

    Wt = W.T.astype(jnp.float32)                                   # (Fin, Fout)
    bias = b.astype(jnp.float32)
    if Fout_p != Fout:
        Wt = jnp.pad(Wt, ((0, 0), (0, Fout_p - Fout)))
        bias = jnp.pad(bias, (0, Fout_p - Fout))
    bias2d = bias.reshape(1, Fout_p)

    # Reassociated small matmul in the wrapper: xsW = (dhat * x) @ W.T.
    xsw = jnp.einsum("bnf,fo->bno", dhat * x.astype(jnp.float32), Wt)

    stream_dtype = jnp.bfloat16 if use_bf16 else jnp.float32
    A_s = A.astype(stream_dtype)
    xsw_s = xsw.astype(stream_dtype)
    item = 2 if use_bf16 else 4

    # Generation-aware VMEM budgeting.
    vmem_cap = _vmem_capacity_bytes()
    budget = max(16 << 20, (vmem_cap * 2) // 3)
    TB, TM, est_bytes = _choose_tiles(B, N, Fout_p, item, item, 4, budget)
    TB, TM = _ensure_multistep(B, N, TB, TM)
    grid = (B // TB, N // TM)

    # Always set the scoped-VMEM limit (v5e default is only 16 MiB) and clamp
    # it to 7/8 of physical capacity (56 MiB on v7x, 112 MiB on v5e/v6e).
    vmem_limit = min((vmem_cap * 7) // 8, max(est_bytes + (8 << 20), 32 << 20))

    out_p = pl.pallas_call(
        graphconv_kernel,
        out_shape=jax.ShapeDtypeStruct((B, N, Fout_p), x.dtype),
        grid_spec=pltpu.PrefetchScalarGridSpec(
            num_scalar_prefetch=0,
            grid=grid,
            in_specs=[
                pl.BlockSpec((TB, N, Fout_p), lambda bi, ri: (bi, 0, 0)),   # xsW
                pl.BlockSpec((TB, TM, 1), lambda bi, ri: (bi, ri, 0)),      # dhat rows
                pl.BlockSpec((TB, TM, N), lambda bi, ri: (bi, ri, 0)),      # A rows
                pl.BlockSpec((TB, TM, 1), lambda bi, ri: (bi, ri, 0)),      # mask rows
                pl.BlockSpec((1, Fout_p), lambda bi, ri: (0, 0)),           # bias
            ],
            out_specs=pl.BlockSpec((TB, TM, Fout_p), lambda bi, ri: (bi, ri, 0)),
        ),
        compiler_params=pltpu.CompilerParams(
            dimension_semantics=("parallel", "parallel"),
            vmem_limit_bytes=vmem_limit),
    )(xsw_s, dhat, A_s, mask, bias2d)

    out = out_p[..., :Fout] if Fout_p != Fout else out_p
    # Module returns (x, A, mask) with A unsqueezed to (B,N,N,1) and mask (B,N,1).
    return out, A[..., None], mask


def graph_conv_reference(x, A, mask, W, b):
    """Pure-JAX reference mirroring the PyTorch forward (K=1, n_relations=1)."""
    B, N, _ = A.shape
    if mask.ndim == 2:
        mask = mask[:, :, None]
    I = jnp.eye(N, dtype=x.dtype)[None]
    A_hat = A + I
    d_hat = (jnp.sum(A_hat, axis=1) + 1e-5) ** (-0.5)
    L = d_hat[:, :, None] * A_hat * d_hat[:, None, :]
    y = jnp.einsum("bij,bjf->bif", L, x)
    out = jnp.einsum("bnf,of->bno", y, W) + b[None, None, :]
    return out * mask


if __name__ == "__main__":
    B, N, Fin, Fout = 2, 16, 8, 32
    key = jax.random.PRNGKey(0)
    kx, ka, km, kw, kb = jax.random.split(key, 5)

    x = jax.random.normal(kx, (B, N, Fin), dtype=jnp.float32)
    # symmetric non-negative adjacency
    A_raw = jax.random.uniform(ka, (B, N, N), dtype=jnp.float32)
    A = (A_raw + jnp.swapaxes(A_raw, 1, 2)) * 0.5
    mask = (jax.random.uniform(km, (B, N)) > 0.2).astype(jnp.float32)

    # deterministic nn.Linear-style params (Fout, Fin) and (Fout,)
    bound = 1.0 / (Fin ** 0.5)
    W = jax.random.uniform(kw, (Fout, Fin), minval=-bound, maxval=bound,
                           dtype=jnp.float32)
    b = jax.random.uniform(kb, (Fout,), minval=-bound, maxval=bound,
                           dtype=jnp.float32)

    ref = graph_conv_reference(x, A, mask, W, b)

    # Exact path (f32 streams): tight tolerance.
    out_f32, A_out, mask_out = graph_conv_forward(x, A, mask, W, b,
                                                  use_bf16=False)
    out_f32 = jax.block_until_ready(out_f32)
    assert out_f32.shape == (B, N, Fout)
    assert A_out.shape == (B, N, N, 1) and mask_out.shape == (B, N, 1)
    assert jnp.allclose(out_f32, ref, atol=1e-4, rtol=1e-4), "f32 mismatch"

    # Default fast path (bf16 A / xsW streams, f32 MXU accumulation).
    out_bf16, _, _ = graph_conv_forward(x, A, mask, W, b)
    out_bf16 = jax.block_until_ready(out_bf16)
    assert out_bf16.shape == (B, N, Fout)
    assert jnp.allclose(out_bf16, ref, atol=2e-2, rtol=2e-2), "bf16 mismatch"

    print("KERNEL_OK")
</pallas_src>

<mosaic_0001>
module attributes {stable_mosaic.version = 11 : i64} {
  func.func @graphconv_kernel(%arg0: i32, %arg1: i32, %arg2: memref<1x16x32xf32, #tpu.memory_space<vmem>>, %arg3: memref<1x16x1xf32, #tpu.memory_space<vmem>>, %arg4: memref<1x16x16xf32, #tpu.memory_space<vmem>>, %arg5: memref<1x16x1xf32, #tpu.memory_space<vmem>>, %arg6: memref<1x32xf32, #tpu.memory_space<vmem>>, %arg7: memref<1x16x32xf32, #tpu.memory_space<vmem>>) attributes {dimension_semantics = [#tpu.dimension_semantics<parallel>, #tpu.dimension_semantics<parallel>], iteration_bounds = array<i64: 2, 1>, scalar_prefetch = 0 : i64, scratch_operands = 0 : i64, tpu.core_type = #tpu.core_type<tc>, window_params = [{transform_indices = @transform_0, window_bounds = array<i64: 1, 16, 32>}, {transform_indices = @transform_1, window_bounds = array<i64: 1, 16, 1>}, {transform_indices = @transform_2, window_bounds = array<i64: 1, 16, 16>}, {transform_indices = @transform_3, window_bounds = array<i64: 1, 16, 1>}, {pipeline_mode = #tpu.pipeline_mode<synchronous>, transform_indices = @transform_4, window_bounds = array<i64: 1, 32>}, {transform_indices = @transform_5, window_bounds = array<i64: 1, 16, 32>}]} {
    %c16_i32 = arith.constant 16 : i32
    %0 = arith.muli %arg1, %c16_i32 : i32
    %1 = tpu.assume_multiple %0, 16 : i32
    %c0 = arith.constant 0 : index
    %c0_0 = arith.constant 0 : index
    %c0_1 = arith.constant 0 : index
    %2 = vector.load %arg4[%c0, %c0_0, %c0_1] : memref<1x16x16xf32, #tpu.memory_space<vmem>>, vector<1x16x16xf32>
    %c0_2 = arith.constant 0 : index
    %c0_3 = arith.constant 0 : index
    %c0_4 = arith.constant 0 : index
    %3 = vector.load %arg2[%c0_2, %c0_3, %c0_4] : memref<1x16x32xf32, #tpu.memory_space<vmem>>, vector<1x16x32xf32>
    "tpu.trace_start"() <{level = 10 : i32, message = "brn,bnf->brf"}> : () -> ()
    %cst = arith.constant dense<0.000000e+00> : vector<1x16x32xf32>
    %4 = tpu.matmul %2, %3, %cst {dimension_numbers = #tpu.dot_dimension_numbers<[2], [1], [1], [2], [0, 0, 0, 1, 1, 2], [0], [0]>} : vector<1x16x16xf32>, vector<1x16x32xf32>, vector<1x16x32xf32> -> vector<1x16x32xf32>
    "tpu.trace_stop"() : () -> ()
    %c0_5 = arith.constant 0 : index
    %5 = arith.index_cast %1 : i32 to index
    %c0_6 = arith.constant 0 : index
    %6 = vector.load %arg2[%c0_5, %5, %c0_6] : memref<1x16x32xf32, #tpu.memory_space<vmem>>, vector<1x16x32xf32>
    %c0_7 = arith.constant 0 : index
    %c0_8 = arith.constant 0 : index
    %c0_9 = arith.constant 0 : index
    %7 = vector.load %arg3[%c0_7, %c0_8, %c0_9] : memref<1x16x1xf32, #tpu.memory_space<vmem>>, vector<1x16x1xf32>
    %8 = arith.addf %4, %6 : vector<1x16x32xf32>
    %9 = vector.broadcast %7 : vector<1x16x1xf32> to vector<1x16x32xf32>
    %10 = arith.mulf %9, %8 : vector<1x16x32xf32>
    %c0_10 = arith.constant 0 : index
    %c0_11 = arith.constant 0 : index
    %11 = vector.load %arg6[%c0_10, %c0_11] : memref<1x32xf32, #tpu.memory_space<vmem>>, vector<1x32xf32>
    %12 = vector.shape_cast %11 : vector<1x32xf32> to vector<1x1x32xf32>
    %13 = vector.broadcast %12 : vector<1x1x32xf32> to vector<1x16x32xf32>
    %14 = arith.addf %10, %13 : vector<1x16x32xf32>
    %c0_12 = arith.constant 0 : index
    %c0_13 = arith.constant 0 : index
    %c0_14 = arith.constant 0 : index
    %15 = vector.load %arg5[%c0_12, %c0_13, %c0_14] : memref<1x16x1xf32, #tpu.memory_space<vmem>>, vector<1x16x1xf32>
    %16 = vector.broadcast %15 : vector<1x16x1xf32> to vector<1x16x32xf32>
    %17 = arith.mulf %14, %16 : vector<1x16x32xf32>
    %c0_15 = arith.constant 0 : index
    %c0_16 = arith.constant 0 : index
    %c0_17 = arith.constant 0 : index
    %18 = vector.load %arg7[%c0_15, %c0_16, %c0_17] : memref<1x16x32xf32, #tpu.memory_space<vmem>>, vector<1x16x32xf32>
    tpu.vector_store %arg7[%c0_15, %c0_16, %c0_17], %17 {strides = array<i32>} : memref<1x16x32xf32, #tpu.memory_space<vmem>>, vector<1x16x32xf32>,
    return
  }
  func.func @transform_0(%arg0: i32, %arg1: i32) -> (i32, i32, i32) {
    %c0_i32 = arith.constant 0 : i32
    %c0_i32_0 = arith.constant 0 : i32
    %c0_i32_1 = arith.constant 0 : i32
    return %arg0, %c0_i32, %c0_i32_0 : i32, i32, i32
  }
  func.func @transform_1(%arg0: i32, %arg1: i32) -> (i32, i32, i32) {
    %c0_i32 = arith.constant 0 : i32
    %c0_i32_0 = arith.constant 0 : i32
    return %arg0, %arg1, %c0_i32 : i32, i32, i32
  }
  func.func @transform_2(%arg0: i32, %arg1: i32) -> (i32, i32, i32) {
    %c0_i32 = arith.constant 0 : i32
    %c0_i32_0 = arith.constant 0 : i32
    return %arg0, %arg1, %c0_i32 : i32, i32, i32
  }
  func.func @transform_3(%arg0: i32, %arg1: i32) -> (i32, i32, i32) {
    %c0_i32 = arith.constant 0 : i32
    %c0_i32_0 = arith.constant 0 : i32
    return %arg0, %arg1, %c0_i32 : i32, i32, i32
  }
  func.func @transform_4(%arg0: i32, %arg1: i32) -> (i32, i32) {
    %c0_i32 = arith.constant 0 : i32
    %c0_i32_0 = arith.constant 0 : i32
    %c0_i32_1 = arith.constant 0 : i32
    return %c0_i32, %c0_i32_0 : i32, i32
  }
  func.func @transform_5(%arg0: i32, %arg1: i32) -> (i32, i32, i32) {
    %c0_i32 = arith.constant 0 : i32
    %c0_i32_0 = arith.constant 0 : i32
    return %arg0, %arg1, %c0_i32 : i32, i32, i32
  }
}

</mosaic_0001>

<llo_original>
// kernel: tpu_custom_call.1
$region0: #{tpu_custom_call.1}
  #allocation0 [shape = 'u32[]', space=smem, size = 0x4, offset = 0x4, fixed_abs, tag = 'smem constant byte address 0x4 - core index']
  #allocation1 [shape = 'u32[144,128]{1,0:T(1,128)}', space=vmem, size = 0x12000, scoped, tag = 'internal scratch']
  %s0 = inlined_call_operand.vmem [shape: f32[2,16,32], index: 0, kind: input, shape index: {}]
  %s1 = inlined_call_operand.vmem [shape: f32[2,16,1], index: 1, kind: input, shape index: {}]
  %s2 = inlined_call_operand.vmem [shape: f32[2,16,16], index: 2, kind: input, shape index: {}]
  %s3 = inlined_call_operand.vmem [shape: f32[2,16,1], index: 3, kind: input, shape index: {}]
  %s4 = inlined_call_operand.vmem [shape: f32[1,32], index: 4, kind: input, shape index: {}]
  %s5 = inlined_call_operand.hbm [shape: f32[2,16,32], index: 5, kind: output, shape index: {}]
  %s6 = sld [smem:[#allocation0]]
  $region53: #{tpu_custom_call.1} parent=0
    _
  %s8 = ssub.s32 1, %s6
  %s9 = scalar_select 0, %s8, %s6
  $region1: #{tpu_custom_call.1} parent=0
    #allocation2 [shape = 'u8[16384]{0}', space=vmem, size = 0x4000, scoped, tag = 'output window, operand 0']
    #allocation3 [shape = 's32[2]{0}', space=sflag, size = 0x8, scoped, tag = 'scoped memory for tpu_custom_call.1']
    %10 = vsyncpa [#allocation3], 0
    %s11 = scalar_lea.sflag [#allocation3], 1
    %12 = vsyncpa %s11, 0
    loop: start=0, step=1, limit=4
    $region2: #{tpu_custom_call.1} parent=1 // loop_pre_header
      _
    $region3: #{tpu_custom_call.1} parent=1 // loop_header
      %s14 = sphi 0, %s18
      %p15 = scmp.ge.s32.totalorder %s14, 4
      %s21 = sphi 0, %s33
      %s22 = sphi 0, %s29
      %s23 = sphi 0, %s21
      %s24 = sphi 0, %s22
      %s25 = sphi 0, %s23
      %s26 = sphi 0, %s24
      %s36 = sphi 0, %s38
      %s39 = sphi 0, %s36
      %s40 = sphi 0, %s39
      %s56 = sphi 0, %s40
      %s64 = sphi 0, %s66
      %s67 = sphi 0, %s64
      %s68 = sphi 0, %s67
      %s84 = sphi 0, %s68
      %s92 = sphi 0, %s94
      %s95 = sphi 0, %s92
      %s96 = sphi 0, %s95
      %s112 = sphi 0, %s96
      %s120 = sphi 0, %s122
      %s123 = sphi 0, %s120
      %s124 = sphi 0, %s123
      %s140 = sphi 0, %s124
      %s144 = sphi 0, %s144
      %s146 = sphi 0, %s144
      %s147 = sphi 0, %s146
      %s161 = sphi 0, %s147
      %s169 = sphi 0, %s171
      %s172 = sphi 0, %s169
      %s173 = sphi 0, %s172
      %s189 = sphi 0, %s173
    $region4: #{tpu_custom_call.1} parent=1 // loop_header_branch
      %17 = sbr.rel (%p15) target = $region8
    $region5: #{tpu_custom_call.1} parent=1 // loop_body
      %s19 = ssub.s32 %s14, 1
      %s20 = ssub.s32 %s14, 2
      %s27 = sadd.s32 1, %s22
      %p28 = scmp.ge.s32.totalorder %s27, 1
      %s29 = scalar_select %p28, 0, %s27
      %s30 = sadd.s32 1, %s21
      %s31 = scalar_select %p28, %s30, %s21
      %p32 = scmp.ge.s32.totalorder %s31, 2
      %s33 = scalar_select %p32, 0, %s31
      %s34 = ssub.s32 %s21, %s33
      %p35 = scmp.eq.s32.totalorder %s34, 0
      %s37 = sadd.s32 %s36, 1
      %s38 = scalar_select %p35, %s36, %s37
      %p41 = pneg %p35
      %p42 = scmp.eq.s32.totalorder %s14, 1
      %p43 = por %p41, %p42
      %p44 = scmp.ne.s32.totalorder %s36, %s39
      %p45 = scmp.eq.s32.totalorder %s14, 0
      %p46 = por %p44, %p45
      %p47 = scmp.ne.s32.totalorder %s36, %s39
      %p48 = scmp.eq.s32.totalorder %s19, 1
      %p49 = por %p47, %p48
      %p50 = scmp.ne.s32.totalorder %s39, %s40
      %p51 = scmp.eq.s32.totalorder %s19, 0
      %p52 = por %p50, %p51
      %p53 = scmp.ne.s32.totalorder %s39, %s40
      %p54 = scmp.eq.s32.totalorder %s20, 1
      %p55 = por %p53, %p54
      %p57 = scmp.ne.s32.totalorder %s40, %s56
      %p58 = scmp.eq.s32.totalorder %s20, 0
      %p59 = por %p57, %p58
      %s60 = ssub.s32 %s21, %s33
      %s61 = ssub.s32 %s22, %s29
      %s62 = sor.u32 %s60, %s61
      %p63 = scmp.eq.s32.totalorder %s62, 0
      %s65 = sadd.s32 %s64, 1
      %s66 = scalar_select %p63, %s64, %s65
      %p69 = pneg %p63
      %p70 = scmp.eq.s32.totalorder %s14, 1
      %p71 = por %p69, %p70
      %p72 = scmp.ne.s32.totalorder %s64, %s67
      %p73 = scmp.eq.s32.totalorder %s14, 0
      %p74 = por %p72, %p73
      %p75 = scmp.ne.s32.totalorder %s64, %s67
      %p76 = scmp.eq.s32.totalorder %s19, 1
      %p77 = por %p75, %p76
      %p78 = scmp.ne.s32.totalorder %s67, %s68
      %p79 = scmp.eq.s32.totalorder %s19, 0
      %p80 = por %p78, %p79
      %p81 = scmp.ne.s32.totalorder %s67, %s68
      %p82 = scmp.eq.s32.totalorder %s20, 1
      %p83 = por %p81, %p82
      %p85 = scmp.ne.s32.totalorder %s68, %s84
      %p86 = scmp.eq.s32.totalorder %s20, 0
      %p87 = por %p85, %p86
      %s88 = ssub.s32 %s21, %s33
      %s89 = ssub.s32 %s22, %s29
      %s90 = sor.u32 %s88, %s89
      %p91 = scmp.eq.s32.totalorder %s90, 0
      %s93 = sadd.s32 %s92, 1
      %s94 = scalar_select %p91, %s92, %s93
      %p97 = pneg %p91
      %p98 = scmp.eq.s32.totalorder %s14, 1
      %p99 = por %p97, %p98
      %p100 = scmp.ne.s32.totalorder %s92, %s95
      %p101 = scmp.eq.s32.totalorder %s14, 0
      %p102 = por %p100, %p101
      %p103 = scmp.ne.s32.totalorder %s92, %s95
      %p104 = scmp.eq.s32.totalorder %s19, 1
      %p105 = por %p103, %p104
      %p106 = scmp.ne.s32.totalorder %s95, %s96
      %p107 = scmp.eq.s32.totalorder %s19, 0
      %p108 = por %p106, %p107
      %p109 = scmp.ne.s32.totalorder %s95, %s96
      %p110 = scmp.eq.s32.totalorder %s20, 1
      %p111 = por %p109, %p110
      %p113 = scmp.ne.s32.totalorder %s96, %s112
      %p114 = scmp.eq.s32.totalorder %s20, 0
      %p115 = por %p113, %p114
      %s116 = ssub.s32 %s21, %s33
      %s117 = ssub.s32 %s22, %s29
      %s118 = sor.u32 %s116, %s117
      %p119 = scmp.eq.s32.totalorder %s118, 0
      %s121 = sadd.s32 %s120, 1
      %s122 = scalar_select %p119, %s120, %s121
      %p125 = pneg %p119
      %p126 = scmp.eq.s32.totalorder %s14, 1
      %p127 = por %p125, %p126
      %p128 = scmp.ne.s32.totalorder %s120, %s123
      %p129 = scmp.eq.s32.totalorder %s14, 0
      %p130 = por %p128, %p129
      %p131 = scmp.ne.s32.totalorder %s120, %s123
      %p132 = scmp.eq.s32.totalorder %s19, 1
      %p133 = por %p131, %p132
      %p134 = scmp.ne.s32.totalorder %s123, %s124
      %p135 = scmp.eq.s32.totalorder %s19, 0
      %p136 = por %p134, %p135
      %p137 = scmp.ne.s32.totalorder %s123, %s124
      %p138 = scmp.eq.s32.totalorder %s20, 1
      %p139 = por %p137, %p138
      %p141 = scmp.ne.s32.totalorder %s124, %s140
      %p142 = scmp.eq.s32.totalorder %s20, 0
      %p143 = por %p141, %p142
      %s145 = sadd.s32 %s144, 1
      %p148 = scmp.eq.s32.totalorder %s14, 1
      %p149 = scmp.ne.s32.totalorder %s144, %s146
      %p150 = scmp.eq.s32.totalorder %s14, 0
      %p151 = por %p149, %p150
      %p152 = scmp.ne.s32.totalorder %s144, %s146
      %p153 = scmp.eq.s32.totalorder %s19, 1
      %p154 = por %p152, %p153
      %p155 = scmp.ne.s32.totalorder %s146, %s147
      %p156 = scmp.eq.s32.totalorder %s19, 0
      %p157 = por %p155, %p156
      %p158 = scmp.ne.s32.totalorder %s146, %s147
      %p159 = scmp.eq.s32.totalorder %s20, 1
      %p160 = por %p158, %p159
      %p162 = scmp.ne.s32.totalorder %s147, %s161
      %p163 = scmp.eq.s32.totalorder %s20, 0
      %p164 = por %p162, %p163
      %s165 = ssub.s32 %s21, %s33
      %s166 = ssub.s32 %s22, %s29
      %s167 = sor.u32 %s165, %s166
      %p168 = scmp.eq.s32.totalorder %s167, 0
      %s170 = sadd.s32 %s169, 1
      %s171 = scalar_select %p168, %s169, %s170
      %p174 = pneg %p168
      %p175 = scmp.eq.s32.totalorder %s14, 1
      %p176 = por %p174, %p175
      %p177 = scmp.ne.s32.totalorder %s169, %s172
      %p178 = scmp.eq.s32.totalorder %s14, 0
      %p179 = por %p177, %p178
      %p180 = scmp.ne.s32.totalorder %s169, %s172
      %p181 = scmp.eq.s32.totalorder %s19, 1
      %p182 = por %p180, %p181
      %p183 = scmp.ne.s32.totalorder %s172, %s173
      %p184 = scmp.eq.s32.totalorder %s19, 0
      %p185 = por %p183, %p184
      %p186 = scmp.ne.s32.totalorder %s172, %s173
      %p187 = scmp.eq.s32.totalorder %s20, 1
      %p188 = por %p186, %p187
      %p190 = scmp.ne.s32.totalorder %s173, %s189
      %p191 = scmp.eq.s32.totalorder %s20, 0
      %p192 = por %p190, %p191
      %p193 = scmp.le.s32.totalorder 1, %s14
      %p194 = scmp.lt.s32.totalorder %s14, 3
      %p195 = pnand %p193, %p194
      %p196 = pneg %p195
      // Predicated region
      $region9: #{tpu_custom_call.1} parent=5 // pred_check
        _
      $region10: #{tpu_custom_call.1} parent=5 // pred_check_branch
        %198 = sbr.rel (%p195) target = $region12
      $region11: #{tpu_custom_call.1} parent=5 // pred_region
        %s199 = ssub.s32 %s14, 1
        // Predicated region
        $region13: #{tpu_custom_call.1} parent=11 // pred_check
          %p200 = pneg %p157
        $region14: #{tpu_custom_call.1} parent=11 // pred_check_branch
          %202 = sbr.rel (%p200) target = $region16
        $region15: #{tpu_custom_call.1} parent=11 // pred_region
          _
        $region16: #{tpu_custom_call.1} parent=11 // pred_fallthru
          _
      $region12: #{tpu_custom_call.1} parent=5 // pred_fallthru
        _
      %p203 = scmp.lt.s32.totalorder %s14, 2
      // Predicated region
      $region17: #{tpu_custom_call.1} parent=5 // pred_check
        %p204 = pneg %p203
      $region18: #{tpu_custom_call.1} parent=5 // pred_check_branch
        %206 = sbr.rel (%p204) target = $region20
      $region19: #{tpu_custom_call.1} parent=5 // pred_region
        // Predicated region
        $region21: #{tpu_custom_call.1} parent=19 // pred_check
          %p207 = pneg %p46
        $region22: #{tpu_custom_call.1} parent=19 // pred_check_branch
          %209 = sbr.rel (%p207) target = $region24
        $region23: #{tpu_custom_call.1} parent=19 // pred_region
          %p210 = scmp.lt.s32.totalorder %s21, 1
          %s211 = scalar_select %p210, %s21, 1
          %s212 = smul.addr %s211, 2
          %s213 = smul.addr %s212, 8
          %s214 = scalar_lea.vmem %s0, %s213
        $region24: #{tpu_custom_call.1} parent=19 // pred_fallthru
          _
        // Predicated region
        $region25: #{tpu_custom_call.1} parent=19 // pred_check
          %p215 = pneg %p74
        $region26: #{tpu_custom_call.1} parent=19 // pred_check_branch
          %217 = sbr.rel (%p215) target = $region28
        $region27: #{tpu_custom_call.1} parent=19 // pred_region
          %s218 = smul.u32 2, %s22
          %p219 = scmp.lt.s32.totalorder %s21, 1
          %s220 = scalar_select %p219, %s21, 1
          %p221 = scmp.lt.s32.totalorder %s218, 1
          %s222 = scalar_select %p221, %s218, 1
          %s223 = smul.addr %s220, 2
          %s224 = sadd.s32 %s222, %s223
          %s225 = smul.addr %s224, 8
          %s226 = scalar_lea.vmem %s1, %s225
          %s227 = smul.u32 2, %s22
        $region28: #{tpu_custom_call.1} parent=19 // pred_fallthru
          _
        // Predicated region
        $region29: #{tpu_custom_call.1} parent=19 // pred_check
          %p228 = pneg %p102
        $region30: #{tpu_custom_call.1} parent=19 // pred_check_branch
          %230 = sbr.rel (%p228) target = $region32
        $region31: #{tpu_custom_call.1} parent=19 // pred_region
          %s231 = smul.u32 2, %s22
          %p232 = scmp.lt.s32.totalorder %s21, 1
          %s233 = scalar_select %p232, %s21, 1
          %p234 = scmp.lt.s32.totalorder %s231, 1
          %s235 = scalar_select %p234, %s231, 1
          %s236 = smul.addr %s233, 2
          %s237 = sadd.s32 %s235, %s236
          %s238 = smul.addr %s237, 8
          %s239 = scalar_lea.vmem %s2, %s238
          %s240 = smul.u32 2, %s22
        $region32: #{tpu_custom_call.1} parent=19 // pred_fallthru
          _
        // Predicated region
        $region33: #{tpu_custom_call.1} parent=19 // pred_check
          %p241 = pneg %p130
        $region34: #{tpu_custom_call.1} parent=19 // pred_check_branch
          %243 = sbr.rel (%p241) target = $region36
        $region35: #{tpu_custom_call.1} parent=19 // pred_region
          %s244 = smul.u32 2, %s22
          %p245 = scmp.lt.s32.totalorder %s21, 1
          %s246 = scalar_select %p245, %s21, 1
          %p247 = scmp.lt.s32.totalorder %s244, 1
          %s248 = scalar_select %p247, %s244, 1
          %s249 = smul.addr %s246, 2
          %s250 = sadd.s32 %s248, %s249
          %s251 = smul.addr %s250, 8
          %s252 = scalar_lea.vmem %s3, %s251
          %s253 = smul.u32 2, %s22
        $region36: #{tpu_custom_call.1} parent=19 // pred_fallthru
          _
      $region20: #{tpu_custom_call.1} parent=5 // pred_fallthru
        _
      %p254 = scmp.le.s32.totalorder 1, %s14
      %p255 = scmp.lt.s32.totalorder %s14, 3
      %p256 = pnand %p254, %p255
      %p257 = pneg %p256
      // Predicated region
      $region37: #{tpu_custom_call.1} parent=5 // pred_check
        _
      $region38: #{tpu_custom_call.1} parent=5 // pred_check_branch
        %259 = sbr.rel (%p256) target = $region40
      $region39: #{tpu_custom_call.1} parent=5 // pred_region
        %s260 = ssub.s32 %s14, 1
        %p261 = scmp.lt.s32.totalorder %s23, 1
        %s262 = scalar_select %p261, %s23, 1
        %s263 = smul.addr %s262, 2
        %s264 = smul.addr %s263, 8
        %s265 = scalar_lea.vmem %s0, %s264
        %p266 = pneg %p52
        %p267 = pneg %p49
        %s268 = smul.u32 2, %s24
        %p269 = scmp.lt.s32.totalorder %s23, 1
        %s270 = scalar_select %p269, %s23, 1
        %p271 = scmp.lt.s32.totalorder %s268, 1
        %s272 = scalar_select %p271, %s268, 1
        %s273 = smul.addr %s270, 2
        %s274 = sadd.s32 %s272, %s273
        %s275 = smul.addr %s274, 8
        %s276 = scalar_lea.vmem %s1, %s275
        %p277 = pneg %p80
        %p278 = pneg %p77
        %s279 = smul.u32 2, %s24
        %p280 = scmp.lt.s32.totalorder %s23, 1
        %s281 = scalar_select %p280, %s23, 1
        %p282 = scmp.lt.s32.totalorder %s279, 1
        %s283 = scalar_select %p282, %s279, 1
        %s284 = smul.addr %s281, 2
        %s285 = sadd.s32 %s283, %s284
        %s286 = smul.addr %s285, 8
        %s287 = scalar_lea.vmem %s2, %s286
        %p288 = pneg %p108
        %p289 = pneg %p105
        %s290 = smul.u32 2, %s24
        %p291 = scmp.lt.s32.totalorder %s23, 1
        %s292 = scalar_select %p291, %s23, 1
        %p293 = scmp.lt.s32.totalorder %s290, 1
        %s294 = scalar_select %p293, %s290, 1
        %s295 = smul.addr %s292, 2
        %s296 = sadd.s32 %s294, %s295
        %s297 = smul.addr %s296, 8
        %s298 = scalar_lea.vmem %s3, %s297
        %p299 = pneg %p136
        %p300 = pneg %p133
        %p301 = pneg %p157
        %p302 = pneg %p154
        %p303 = pneg %p185
        %p304 = pneg %p182
        %s305 = sand.u32 %s172, 1
        %s306 = scalar_lea.sflag [#allocation3], %s305
        %s307 = sand.u32 %s172, 1
        %s308 = smul.addr %s307, 16
        %s309 = scalar_lea.vmem [#allocation2], %s308
        %p310 = scmp.lt.s32.totalorder %s23, 1
        %s311 = scalar_select %p310, %s23, 1
        %s312 = smul.addr %s311, 2
        %s313 = smul.addr %s312, 8
        %s314 = scalar_lea.vmem %s0, %s313
        %s315 = smul.u32 2, %s24
        %p316 = scmp.lt.s32.totalorder %s23, 1
        %s317 = scalar_select %p316, %s23, 1
        %p318 = scmp.lt.s32.totalorder %s315, 1
        %s319 = scalar_select %p318, %s315, 1
        %s320 = smul.addr %s317, 2
        %s321 = sadd.s32 %s319, %s320
        %s322 = smul.addr %s321, 8
        %s323 = scalar_lea.vmem %s1, %s322
        %s324 = smul.u32 2, %s24
        %s325 = smul.u32 2, %s24
        %p326 = scmp.lt.s32.totalorder %s23, 1
        %s327 = scalar_select %p326, %s23, 1
        %p328 = scmp.lt.s32.totalorder %s325, 1
        %s329 = scalar_select %p328, %s325, 1
        %s330 = smul.addr %s327, 2
        %s331 = sadd.s32 %s329, %s330
        %s332 = smul.addr %s331, 8
        %s333 = scalar_lea.vmem %s2, %s332
        %s334 = smul.u32 2, %s24
        %s335 = smul.u32 2, %s24
        %p336 = scmp.lt.s32.totalorder %s23, 1
        %s337 = scalar_select %p336, %s23, 1
        %p338 = scmp.lt.s32.totalorder %s335, 1
        %s339 = scalar_select %p338, %s335, 1
        %s340 = smul.addr %s337, 2
        %s341 = sadd.s32 %s339, %s340
        %s342 = smul.addr %s341, 8
        %s343 = scalar_lea.vmem %s3, %s342
        %s344 = smul.u32 2, %s24
        %s345 = smul.u32 2, %s24
        %s346 = smul.u32 %s24, 16
        %v347 = vld [vmem:[%s333] sm:$0xff]
        %v348 = vld [vmem:[%s333 + $0x8] sm:$0xff]
        %v349 = vld [vmem:[%s314] sm:$0xff]
        %v350 = vld [vmem:[%s314 + $0x8] sm:$0xff]
        %s351 = scalar_lea.vmem %s314, %s346
        %v352 = vld [vmem:[%s351] sm:$0xff]
        %v353 = vld [vmem:[%s351 + $0x8] sm:$0xff]
        %v354 = vld [vmem:[%s323] sm:$0xff]
        %v355 = vld [vmem:[%s323 + $0x8] sm:$0xff]
        %vm356 = vcmask 130048
        %v358 = vsel %vm356, %v347, 0
        %v361 = vsel %vm356, %v348, 0
        %363 = vmatprep.subr.mxu0 0.0
        %364 = vmatpush1.msra.mxu0 %v349
        %365 = vmatprep.subr.mxu0 0.0
        %366 = vmatpush1.msra.mxu0 %v350
        %367 = vmatprep.subr.mxu0 0.0
        %368 = vmatpush1.msra.mxu0 0.0
        %369 = vmatprep.subr.mxu0 0.0
        %370 = vmatpush1.msra.mxu0 0.0
        %371 = vmatprep.subr.mxu0 0.0
        %372 = vmatpush1.msra.mxu0 0.0
        %373 = vmatprep.subr.mxu0 0.0
        %374 = vmatpush1.msra.mxu0 0.0
        %375 = vmatprep.subr.mxu0 0.0
        %376 = vmatpush1.msra.mxu0 0.0
        %377 = vmatprep.subr.mxu0 0.0
        %378 = vmatpush1.msra.mxu0 0.0
        %379 = vmatprep.subr.mxu0 0.0
        %380 = vmatpush1.msra.mxu0 0.0
        %381 = vmatprep.subr.mxu0 0.0
        %382 = vmatpush1.msra.mxu0 0.0
        %383 = vmatprep.subr.mxu0 0.0
        %384 = vmatpush1.msra.mxu0 0.0
        %385 = vmatprep.subr.mxu0 0.0
        %386 = vmatpush1.msra.mxu0 0.0
        %387 = vmatprep.subr.mxu0 0.0
        %388 = vmatpush1.msra.mxu0 0.0
        %389 = vmatprep.subr.mxu0 0.0
        %390 = vmatpush1.msra.mxu0 0.0
        %391 = vmatprep.subr.mxu0 0.0
        %392 = vmatpush1.msra.mxu0 0.0
        %393 = vmatprep.subr.mxu0 0.0
        %394 = vmatpush1.msra.mxu0 0.0
        %395 = vmatprep.subr.mxu0 0.0
        %396 = vmatpush1.msra.mxu0 0.0
        %397 = vmatprep.subr.mxu0 0.0
        %398 = vmatpush1.msra.mxu0 0.0
        %399 = vmatprep.subr.mxu0 0.0
        %400 = vmatpush1.msra.mxu0 0.0
        %401 = vmatprep.subr.mxu0 0.0
        %402 = vmatpush1.msra.mxu0 0.0
        %403 = vmatprep.subr.mxu0 0.0
        %404 = vmatpush1.msra.mxu0 0.0
        %405 = vmatprep.subr.mxu0 0.0
        %406 = vmatpush1.msra.mxu0 0.0
        %407 = vmatprep.subr.mxu0 0.0
        %408 = vmatpush1.msra.mxu0 0.0
        %409 = vmatprep.subr.mxu0 0.0
        %410 = vmatpush1.msra.mxu0 0.0
        %411 = vmatprep.subr.mxu0 0.0
        %412 = vmatpush1.msra.mxu0 0.0
        %413 = vmatprep.subr.mxu0 0.0
        %414 = vmatpush1.msra.mxu0 0.0
        %415 = vmatprep.subr.mxu0 0.0
        %416 = vmatpush1.msra.mxu0 0.0
        %417 = vmatprep.subr.mxu0 0.0
        %418 = vmatpush1.msra.mxu0 0.0
        %419 = vmatprep.subr.mxu0 0.0
        %420 = vmatpush1.msra.mxu0 0.0
        %421 = vmatprep.subr.mxu0 0.0
        %422 = vmatpush1.msra.mxu0 0.0
        %423 = vmatprep.subr.mxu0 0.0
        %424 = vmatpush1.msra.mxu0 0.0
        %425 = vmatprep.subr.mxu0 0.0
        %426 = vmatpush1.msra.mxu0 0.0
        %427 = vmatprep.mubr.f32.mxu0 0.0
        %428 = vmatmul.mubr.f32.gmra.mrb[0].mxu0 %v358
        %v429 = vpop.f32.mrb[0].mxu0
        %v430 = vadd.f32 %v352, %v429
        %v431 = vpop.f32.mrb[0].mxu0
        %432 = vmatprep.mubr.f32.mxu0 0.0
        %433 = vmatmul.mubr.f32.gmra.mrb[0].mxu0 %v361
        %v434 = vpop.f32.mrb[0].mxu0
        %v435 = vadd.f32 %v353, %v434
        %v436 = vpop.f32.mrb[0].mxu0
        %437 = vdwg.mxu0
        %439 = vset.pattern.permute.xlu0 0
        %440 = vperm.xlu0 %439, %v354
        %v441 = vpop.permute.xlu0 %440
        %444 = vset.pattern.permute.xlu0 0
        %445 = vperm.xlu0 %444, %v355
        %v446 = vpop.permute.xlu0 %445
        %v448 = vmul.f32 %v441, %v430
        %v449 = vmul.f32 %v446, %v435
        %v450 = vld [vmem:[%s4] sm:$0x1]
        %v452 = vlaneseq
        %v453 = vshrl.u32 %v452, 7
        %v454 = vsub.s32 0, %v453
        %v455 = vrot.slane %v450, %v454
        %v457 = vadd.f32 %v448, %v455
        %v458 = vadd.f32 %v449, %v455
        %v459 = vld [vmem:[%s343] sm:$0xff]
        %v460 = vld [vmem:[%s343 + $0x8] sm:$0xff]
        %462 = vset.pattern.permute.xlu0 0
        %463 = vperm.xlu0 %462, %v459
        %v464 = vpop.permute.xlu0 %463
        %467 = vset.pattern.permute.xlu0 0
        %468 = vperm.xlu0 %467, %v460
        %v469 = vpop.permute.xlu0 %468
        %v471 = vmul.f32 %v457, %v464
        %v472 = vmul.f32 %v458, %v469
        %vm473 = vcmask 261120
        %474 = vst.msk [vmem:[%s309] sm:$0xff] %vm473, %v471
        %475 = vst.msk [vmem:[%s309 + $0x8] sm:$0xff] %vm473, %v472
        %s476 = sand.u32 %s172, 1
        %s477 = scalar_lea.sflag [#allocation3], %s476
        %s478 = sand.u32 %s172, 1
        %s479 = smul.addr %s478, 16
        %s480 = scalar_lea.vmem [#allocation2], %s479
        // Predicated region
        $region41: #{tpu_custom_call.1} parent=39 // pred_check
          %p481 = pneg %p182
        $region42: #{tpu_custom_call.1} parent=39 // pred_check_branch
          %483 = sbr.rel (%p481) target = $region44
        $region43: #{tpu_custom_call.1} parent=39 // pred_region
          %s484 = smul.u32 2, %s24
          %s486 = ssub.s32 256, 256
          %487 = vsyncadd %s477, %s486
          %s488 = smul.addr %s23, 2
          %s489 = sadd.s32 %s484, %s488
          %s490 = smul.addr %s489, 128
          %s491 = scalar_lea.hbm %s5, %s490
          %s492 = sshll.u32 %s480, 4
          %s493 = int_to_ptr.vmem [resolvable:$true] %s492
          %498 = dma.vmem_to_hbm [thread:$0]  %s493, 256, %s491, %s477, 128, 128, 8
        $region44: #{tpu_custom_call.1} parent=39 // pred_fallthru
          _
      $region40: #{tpu_custom_call.1} parent=5 // pred_fallthru
        _
      %p499 = scmp.le.s32.totalorder 2, %s14
      // Predicated region
      $region45: #{tpu_custom_call.1} parent=5 // pred_check
        %p500 = pneg %p499
      $region46: #{tpu_custom_call.1} parent=5 // pred_check_branch
        %502 = sbr.rel (%p500) target = $region48
      $region47: #{tpu_custom_call.1} parent=5 // pred_region
        %s503 = ssub.s32 %s14, 2
        // Predicated region
        $region49: #{tpu_custom_call.1} parent=47 // pred_check
          %p504 = pneg %p188
        $region50: #{tpu_custom_call.1} parent=47 // pred_check_branch
          %506 = sbr.rel (%p504) target = $region52
        $region51: #{tpu_custom_call.1} parent=47 // pred_region
          %s507 = sand.u32 %s173, 1
          %s508 = scalar_lea.sflag [#allocation3], %s507
          %s509 = sand.u32 %s173, 1
          %s510 = smul.addr %s509, 16
          %s511 = scalar_lea.vmem [#allocation2], %s510
          %512 = dma.done %s508, 256
        $region52: #{tpu_custom_call.1} parent=47 // pred_fallthru
          _
      $region48: #{tpu_custom_call.1} parent=5 // pred_fallthru
        _
    $region6: #{tpu_custom_call.1} parent=1 // loop_footer
      %s18 = sadd.s32 1, %s14
    $region7: #{tpu_custom_call.1} parent=1 // loop_footer_branch
      %13 = sbr.rel target = $region3
    $region8: #{tpu_custom_call.1} parent=1 // loop_exit
      _
    %513 = vsyncpa [#allocation3], 1
    %s514 = scalar_lea.sflag [#allocation3], 1
    %515 = vsyncpa %s514, 1

</llo_original>
